<compile_context>
chip_gen: v6e
topology: v6e:2x2x1
jax: 0.10.0
libtpu: 0.0.40
codegen_flags: <defaults>
</compile_context>

<pallas_src>
import functools

import jax
import jax.numpy as jnp
from jax.experimental import pallas as pl
from jax.experimental.pallas import tpu as pltpu

IN_DIM = 3
HID = 50
OUT_DIM = 3


def _nspinn_kernel(x_ref, y_ref, t_ref,
                   w1x_ref, w1y_ref, w1t_ref, b1_ref,
                   w2_ref, b2_ref, w3_ref, b3_ref,
                   out_ref):
    # Transposed layout: activations are (feature, tile_n); batch on lanes.
    xr = x_ref[...]            # (1, tile_n)
    yr = y_ref[...]            # (1, tile_n)
    tr = t_ref[...]            # (1, tile_n)

    # Layer 1: 3-wide contraction as broadcast FMA on the VPU.
    #   (HID, 1) * (1, tile_n) broadcasts to (HID, tile_n).
    h = (w1x_ref[...] * xr
         + w1y_ref[...] * yr
         + w1t_ref[...] * tr
         + b1_ref[...])                       # (HID, tile_n)
    h = jnp.tanh(h)

    # Layer 2: (HID, HID) @ (HID, tile_n) on the MXU, f32 accumulation.
    h2 = jnp.dot(w2_ref[...], h, preferred_element_type=jnp.float32)
    h2 = jnp.tanh(h2 + b2_ref[...])           # (HID, tile_n)

    # Layer 3: (OUT, HID) @ (HID, tile_n), lane-dense output store.
    o = jnp.dot(w3_ref[...], h2, preferred_element_type=jnp.float32)
    out_ref[...] = o + b3_ref[...]            # (OUT_DIM, tile_n)


def nspinn_forward(x, y, t, params, *, tile_n=1024):
    """x, y, t: (N, 1) float32.  Returns (N, 3) float32."""
    assert tile_n % 128 == 0, "tile_n must be a multiple of 128 (lane width)"
    w1t, b1, w2t, b2, w3t, b3 = params

    n = x.shape[0]
    # (N, 1) -> (1, N): contiguous column vector, metadata-only reshape.
    xr = x.reshape(1, n)
    yr = y.reshape(1, n)
    tr = t.reshape(1, n)

    # Split the 3 columns of W1 host-side -> kernel does no sub-lane slicing.
    w1x = w1t[:, 0:1]    # (HID, 1)
    w1y = w1t[:, 1:2]
    w1z = w1t[:, 2:3]

    # Effective tile: multiple of 128, no bigger than needed.
    n_pad128 = ((n + 127) // 128) * 128
    tile_eff = min(tile_n, n_pad128)
    n_pad = ((n + tile_eff - 1) // tile_eff) * tile_eff
    if n_pad != n:
        pad = ((0, 0), (0, n_pad - n))
        xr = jnp.pad(xr, pad)
        yr = jnp.pad(yr, pad)
        tr = jnp.pad(tr, pad)

    grid = (n_pad // tile_eff,)

    batch_spec = pl.BlockSpec((1, tile_eff), lambda i: (0, i))
    full = lambda shape: pl.BlockSpec(shape, lambda i: (0, 0))

    out = pl.pallas_call(
        _nspinn_kernel,
        out_shape=jax.ShapeDtypeStruct((OUT_DIM, n_pad), jnp.float32),
        grid_spec=pl.GridSpec(
            grid=grid,
            in_specs=[
                batch_spec,                     # x row   (1, tile)
                batch_spec,                     # y row   (1, tile)
                batch_spec,                     # t row   (1, tile)
                full((HID, 1)),                 # W1[:,0] (50, 1)
                full((HID, 1)),                 # W1[:,1] (50, 1)
                full((HID, 1)),                 # W1[:,2] (50, 1)
                full((HID, 1)),                 # b1      (50, 1)
                full((HID, HID)),               # W2      (50, 50)
                full((HID, 1)),                 # b2      (50, 1)
                full((OUT_DIM, HID)),           # W3      (3, 50)
                full((OUT_DIM, 1)),             # b3      (3, 1)
            ],
            out_specs=pl.BlockSpec((OUT_DIM, tile_eff), lambda i: (0, i)),
        ),
        compiler_params=pltpu.CompilerParams(
            dimension_semantics=("parallel",),
        ),
    )(xr, yr, tr, w1x, w1y, w1z, b1, w2t, b2, w3t, b3)

    # (3, n_pad) -> (n, 3): cheap layout plumbing outside the kernel.
    return out[:, :n].T


def init_params(key):
    """PyTorch nn.Linear-style init, stored in (out_features, in_features) layout."""
    ks = jax.random.split(key, 6)

    def lin(kw, kb, fan_in, fan_out):
        bound = 1.0 / jnp.sqrt(jnp.float32(fan_in))
        wt = jax.random.uniform(kw, (fan_out, fan_in), jnp.float32, -bound, bound)
        b = jax.random.uniform(kb, (fan_out, 1), jnp.float32, -bound, bound)
        return wt, b

    w1t, b1 = lin(ks[0], ks[1], IN_DIM, HID)
    w2t, b2 = lin(ks[2], ks[3], HID, HID)
    w3t, b3 = lin(ks[4], ks[5], HID, OUT_DIM)
    return (w1t, b1, w2t, b2, w3t, b3)


def _reference(x, y, t, params):
    w1t, b1, w2t, b2, w3t, b3 = params
    h = jnp.concatenate([x, y, t], axis=1)     # (N, 3)
    h = jnp.tanh(h @ w1t.T + b1.T)
    h = jnp.tanh(h @ w2t.T + b2.T)
    return h @ w3t.T + b3.T


if __name__ == "__main__":
    key = jax.random.PRNGKey(0)
    kp, kx, ky, kt = jax.random.split(key, 4)

    params = init_params(kp)

    # Case 1: small, non-multiple-of-128 batch -> exercises padding + a
    # multi-step grid (tile_n=256 -> grid of 2).
    N = 300
    x = jax.random.normal(kx, (N, 1), jnp.float32)
    y = jax.random.normal(ky, (N, 1), jnp.float32)
    t = jax.random.normal(kt, (N, 1), jnp.float32)

    out = jax.block_until_ready(nspinn_forward(x, y, t, params, tile_n=256))
    ref = _reference(x, y, t, params)
    assert out.shape == (N, OUT_DIM)
    assert jnp.allclose(out, ref, atol=1e-5, rtol=1e-5)

    # Case 2: aligned batch with the default (large) tile -> single grid step.
    N2 = 1024
    x2 = jax.random.normal(kx, (N2, 1), jnp.float32)
    y2 = jax.random.normal(ky, (N2, 1), jnp.float32)
    t2 = jax.random.normal(kt, (N2, 1), jnp.float32)

    out2 = jax.block_until_ready(nspinn_forward(x2, y2, t2, params))
    ref2 = _reference(x2, y2, t2, params)
    assert out2.shape == (N2, OUT_DIM)
    assert jnp.allclose(out2, ref2, atol=1e-5, rtol=1e-5)

    print("KERNEL_OK")
</pallas_src>

<mosaic_0001>
module attributes {stable_mosaic.version = 11 : i64} {
  func.func @_nspinn_kernel(%arg0: i32, %arg1: memref<1x256xf32, #tpu.memory_space<vmem>>, %arg2: memref<1x256xf32, #tpu.memory_space<vmem>>, %arg3: memref<1x256xf32, #tpu.memory_space<vmem>>, %arg4: memref<50x1xf32, #tpu.memory_space<vmem>>, %arg5: memref<50x1xf32, #tpu.memory_space<vmem>>, %arg6: memref<50x1xf32, #tpu.memory_space<vmem>>, %arg7: memref<50x1xf32, #tpu.memory_space<vmem>>, %arg8: memref<50x50xf32, #tpu.memory_space<vmem>>, %arg9: memref<50x1xf32, #tpu.memory_space<vmem>>, %arg10: memref<3x50xf32, #tpu.memory_space<vmem>>, %arg11: memref<3x1xf32, #tpu.memory_space<vmem>>, %arg12: memref<3x256xf32, #tpu.memory_space<vmem>>) attributes {dimension_semantics = [#tpu.dimension_semantics<parallel>], iteration_bounds = array<i64: 2>, scalar_prefetch = 0 : i64, scratch_operands = 0 : i64, tpu.core_type = #tpu.core_type<tc>, window_params = [{transform_indices = @transform_0, window_bounds = array<i64: 1, 256>}, {transform_indices = @transform_1, window_bounds = array<i64: 1, 256>}, {transform_indices = @transform_2, window_bounds = array<i64: 1, 256>}, {pipeline_mode = #tpu.pipeline_mode<synchronous>, transform_indices = @transform_3, window_bounds = array<i64: 50, 1>}, {pipeline_mode = #tpu.pipeline_mode<synchronous>, transform_indices = @transform_4, window_bounds = array<i64: 50, 1>}, {pipeline_mode = #tpu.pipeline_mode<synchronous>, transform_indices = @transform_5, window_bounds = array<i64: 50, 1>}, {pipeline_mode = #tpu.pipeline_mode<synchronous>, transform_indices = @transform_6, window_bounds = array<i64: 50, 1>}, {pipeline_mode = #tpu.pipeline_mode<synchronous>, transform_indices = @transform_7, window_bounds = array<i64: 50, 50>}, {pipeline_mode = #tpu.pipeline_mode<synchronous>, transform_indices = @transform_8, window_bounds = array<i64: 50, 1>}, {pipeline_mode = #tpu.pipeline_mode<synchronous>, transform_indices = @transform_9, window_bounds = array<i64: 3, 50>}, {pipeline_mode = #tpu.pipeline_mode<synchronous>, transform_indices = @transform_10, window_bounds = array<i64: 3, 1>}, {transform_indices = @transform_11, window_bounds = array<i64: 3, 256>}]} {
    %c0 = arith.constant 0 : index
    %c0_0 = arith.constant 0 : index
    %0 = vector.load %arg1[%c0, %c0_0] : memref<1x256xf32, #tpu.memory_space<vmem>>, vector<1x256xf32>
    %c0_1 = arith.constant 0 : index
    %c0_2 = arith.constant 0 : index
    %1 = vector.load %arg2[%c0_1, %c0_2] : memref<1x256xf32, #tpu.memory_space<vmem>>, vector<1x256xf32>
    %c0_3 = arith.constant 0 : index
    %c0_4 = arith.constant 0 : index
    %2 = vector.load %arg3[%c0_3, %c0_4] : memref<1x256xf32, #tpu.memory_space<vmem>>, vector<1x256xf32>
    %c0_5 = arith.constant 0 : index
    %c0_6 = arith.constant 0 : index
    %3 = vector.load %arg4[%c0_5, %c0_6] : memref<50x1xf32, #tpu.memory_space<vmem>>, vector<50x1xf32>
    %4 = vector.broadcast %3 : vector<50x1xf32> to vector<50x256xf32>
    %5 = vector.broadcast %0 : vector<1x256xf32> to vector<50x256xf32>
    %6 = arith.mulf %4, %5 : vector<50x256xf32>
    %c0_7 = arith.constant 0 : index
    %c0_8 = arith.constant 0 : index
    %7 = vector.load %arg5[%c0_7, %c0_8] : memref<50x1xf32, #tpu.memory_space<vmem>>, vector<50x1xf32>
    %8 = vector.broadcast %7 : vector<50x1xf32> to vector<50x256xf32>
    %9 = vector.broadcast %1 : vector<1x256xf32> to vector<50x256xf32>
    %10 = arith.mulf %8, %9 : vector<50x256xf32>
    %11 = arith.addf %6, %10 : vector<50x256xf32>
    %c0_9 = arith.constant 0 : index
    %c0_10 = arith.constant 0 : index
    %12 = vector.load %arg6[%c0_9, %c0_10] : memref<50x1xf32, #tpu.memory_space<vmem>>, vector<50x1xf32>
    %13 = vector.broadcast %12 : vector<50x1xf32> to vector<50x256xf32>
    %14 = vector.broadcast %2 : vector<1x256xf32> to vector<50x256xf32>
    %15 = arith.mulf %13, %14 : vector<50x256xf32>
    %16 = arith.addf %11, %15 : vector<50x256xf32>
    %c0_11 = arith.constant 0 : index
    %c0_12 = arith.constant 0 : index
    %17 = vector.load %arg7[%c0_11, %c0_12] : memref<50x1xf32, #tpu.memory_space<vmem>>, vector<50x1xf32>
    %18 = vector.broadcast %17 : vector<50x1xf32> to vector<50x256xf32>
    %19 = arith.addf %16, %18 : vector<50x256xf32>
    %20 = math.tanh %19 : vector<50x256xf32>
    %c0_13 = arith.constant 0 : index
    %c0_14 = arith.constant 0 : index
    %21 = vector.load %arg8[%c0_13, %c0_14] : memref<50x50xf32, #tpu.memory_space<vmem>>, vector<50x50xf32>
    %cst = arith.constant dense<0.000000e+00> : vector<50x256xf32>
    %22 = tpu.matmul %21, %20, %cst {dimension_numbers = #tpu.dot_dimension_numbers<[1], [0], [0], [1], [0, 0, 1, 1], [], []>} : vector<50x50xf32>, vector<50x256xf32>, vector<50x256xf32> -> vector<50x256xf32>
    %c0_15 = arith.constant 0 : index
    %c0_16 = arith.constant 0 : index
    %23 = vector.load %arg9[%c0_15, %c0_16] : memref<50x1xf32, #tpu.memory_space<vmem>>, vector<50x1xf32>
    %24 = vector.broadcast %23 : vector<50x1xf32> to vector<50x256xf32>
    %25 = arith.addf %22, %24 : vector<50x256xf32>
    %26 = math.tanh %25 : vector<50x256xf32>
    %c0_17 = arith.constant 0 : index
    %c0_18 = arith.constant 0 : index
    %27 = vector.load %arg10[%c0_17, %c0_18] : memref<3x50xf32, #tpu.memory_space<vmem>>, vector<3x50xf32>
    %cst_19 = arith.constant dense<0.000000e+00> : vector<3x256xf32>
    %28 = tpu.matmul %27, %26, %cst_19 {dimension_numbers = #tpu.dot_dimension_numbers<[1], [0], [0], [1], [0, 0, 1, 1], [], []>} : vector<3x50xf32>, vector<50x256xf32>, vector<3x256xf32> -> vector<3x256xf32>
    %c0_20 = arith.constant 0 : index
    %c0_21 = arith.constant 0 : index
    %29 = vector.load %arg11[%c0_20, %c0_21] : memref<3x1xf32, #tpu.memory_space<vmem>>, vector<3x1xf32>
    %30 = vector.broadcast %29 : vector<3x1xf32> to vector<3x256xf32>
    %31 = arith.addf %28, %30 : vector<3x256xf32>
    %c0_22 = arith.constant 0 : index
    %c0_23 = arith.constant 0 : index
    %32 = vector.load %arg12[%c0_22, %c0_23] : memref<3x256xf32, #tpu.memory_space<vmem>>, vector<3x256xf32>
    tpu.vector_store %arg12[%c0_22, %c0_23], %31 {strides = array<i32>} : memref<3x256xf32, #tpu.memory_space<vmem>>, vector<3x256xf32>,
    return
  }
  func.func @transform_0(%arg0: i32) -> (i32, i32) {
    %c0_i32 = arith.constant 0 : i32
    %c0_i32_0 = arith.constant 0 : i32
    return %c0_i32, %arg0 : i32, i32
  }
  func.func @transform_1(%arg0: i32) -> (i32, i32) {
    %c0_i32 = arith.constant 0 : i32
    %c0_i32_0 = arith.constant 0 : i32
    return %c0_i32, %arg0 : i32, i32
  }
  func.func @transform_2(%arg0: i32) -> (i32, i32) {
    %c0_i32 = arith.constant 0 : i32
    %c0_i32_0 = arith.constant 0 : i32
    return %c0_i32, %arg0 : i32, i32
  }
  func.func @transform_3(%arg0: i32) -> (i32, i32) {
    %c0_i32 = arith.constant 0 : i32
    %c0_i32_0 = arith.constant 0 : i32
    %c0_i32_1 = arith.constant 0 : i32
    return %c0_i32, %c0_i32_0 : i32, i32
  }
  func.func @transform_4(%arg0: i32) -> (i32, i32) {
    %c0_i32 = arith.constant 0 : i32
    %c0_i32_0 = arith.constant 0 : i32
    %c0_i32_1 = arith.constant 0 : i32
    return %c0_i32, %c0_i32_0 : i32, i32
  }
  func.func @transform_5(%arg0: i32) -> (i32, i32) {
    %c0_i32 = arith.constant 0 : i32
    %c0_i32_0 = arith.constant 0 : i32
    %c0_i32_1 = arith.constant 0 : i32
    return %c0_i32, %c0_i32_0 : i32, i32
  }
  func.func @transform_6(%arg0: i32) -> (i32, i32) {
    %c0_i32 = arith.constant 0 : i32
    %c0_i32_0 = arith.constant 0 : i32
    %c0_i32_1 = arith.constant 0 : i32
    return %c0_i32, %c0_i32_0 : i32, i32
  }
  func.func @transform_7(%arg0: i32) -> (i32, i32) {
    %c0_i32 = arith.constant 0 : i32
    %c0_i32_0 = arith.constant 0 : i32
    %c0_i32_1 = arith.constant 0 : i32
    return %c0_i32, %c0_i32_0 : i32, i32
  }
  func.func @transform_8(%arg0: i32) -> (i32, i32) {
    %c0_i32 = arith.constant 0 : i32
    %c0_i32_0 = arith.constant 0 : i32
    %c0_i32_1 = arith.constant 0 : i32
    return %c0_i32, %c0_i32_0 : i32, i32
  }
  func.func @transform_9(%arg0: i32) -> (i32, i32) {
    %c0_i32 = arith.constant 0 : i32
    %c0_i32_0 = arith.constant 0 : i32
    %c0_i32_1 = arith.constant 0 : i32
    return %c0_i32, %c0_i32_0 : i32, i32
  }
  func.func @transform_10(%arg0: i32) -> (i32, i32) {
    %c0_i32 = arith.constant 0 : i32
    %c0_i32_0 = arith.constant 0 : i32
    %c0_i32_1 = arith.constant 0 : i32
    return %c0_i32, %c0_i32_0 : i32, i32
  }
  func.func @transform_11(%arg0: i32) -> (i32, i32) {
    %c0_i32 = arith.constant 0 : i32
    %c0_i32_0 = arith.constant 0 : i32
    return %c0_i32, %arg0 : i32, i32
  }
}

</mosaic_0001>

<llo_original>
// kernel: tpu_custom_call.1
$region0: #{tpu_custom_call.1}
  #allocation0 [shape = 'u32[]', space=smem, size = 0x4, offset = 0x4, fixed_abs, tag = 'smem constant byte address 0x4 - core index']
  #allocation1 [shape = 'u32[144,128]{1,0:T(1,128)}', space=vmem, size = 0x12000, scoped, tag = 'internal scratch']
  %s0 = inlined_call_operand.vmem [shape: f32[1,512], index: 0, kind: input, shape index: {}]
  %s1 = inlined_call_operand.vmem [shape: f32[1,512], index: 1, kind: input, shape index: {}]
  %s2 = inlined_call_operand.vmem [shape: f32[1,512], index: 2, kind: input, shape index: {}]
  %s3 = inlined_call_operand.vmem [shape: f32[50,1], index: 3, kind: input, shape index: {}]
  %s4 = inlined_call_operand.vmem [shape: f32[50,1], index: 4, kind: input, shape index: {}]
  %s5 = inlined_call_operand.vmem [shape: f32[50,1], index: 5, kind: input, shape index: {}]
  %s6 = inlined_call_operand.vmem [shape: f32[50,1], index: 6, kind: input, shape index: {}]
  %s7 = inlined_call_operand.vmem [shape: f32[50,50], index: 7, kind: input, shape index: {}]
  %s8 = inlined_call_operand.vmem [shape: f32[50,1], index: 8, kind: input, shape index: {}]
  %s9 = inlined_call_operand.vmem [shape: f32[3,50], index: 9, kind: input, shape index: {}]
  %s10 = inlined_call_operand.vmem [shape: f32[3,1], index: 10, kind: input, shape index: {}]
  %s11 = inlined_call_operand.hbm [shape: f32[3,512], index: 11, kind: output, shape index: {}]
  %s12 = sld [smem:[#allocation0]]
  $region77: #{tpu_custom_call.1} parent=0
    _
  %s14 = ssub.s32 1, %s12
  %s15 = scalar_select 0, %s14, %s12
  $region1: #{tpu_custom_call.1} parent=0
    #allocation2 [shape = 'u8[8192]{0}', space=vmem, size = 0x2000, scoped, tag = 'output window, operand 0']
    #allocation3 [shape = 's32[2]{0}', space=sflag, size = 0x8, scoped, tag = 'scoped memory for tpu_custom_call.1']
    %16 = vsyncpa [#allocation3], 0
    %s17 = scalar_lea.sflag [#allocation3], 1
    %18 = vsyncpa %s17, 0
    loop: start=0, step=1, limit=4
    $region2: #{tpu_custom_call.1} parent=1 // loop_pre_header
      _
    $region3: #{tpu_custom_call.1} parent=1 // loop_header
      %s20 = sphi 0, %s24
      %p21 = scmp.ge.s32.totalorder %s20, 4
      %s30 = sphi 0, %s32
      %s33 = sphi 0, %s30
      %s34 = sphi 0, %s33
      %s50 = sphi 0, %s34
      %s56 = sphi 0, %s58
      %s59 = sphi 0, %s56
      %s60 = sphi 0, %s59
      %s76 = sphi 0, %s60
      %s82 = sphi 0, %s84
      %s85 = sphi 0, %s82
      %s86 = sphi 0, %s85
      %s102 = sphi 0, %s86
      %s106 = sphi 0, %s106
      %s108 = sphi 0, %s106
      %s109 = sphi 0, %s108
      %s123 = sphi 0, %s109
      %s127 = sphi 0, %s127
      %s129 = sphi 0, %s127
      %s130 = sphi 0, %s129
      %s144 = sphi 0, %s130
      %s148 = sphi 0, %s148
      %s150 = sphi 0, %s148
      %s151 = sphi 0, %s150
      %s165 = sphi 0, %s151
      %s169 = sphi 0, %s169
      %s171 = sphi 0, %s169
      %s172 = sphi 0, %s171
      %s186 = sphi 0, %s172
      %s190 = sphi 0, %s190
      %s192 = sphi 0, %s190
      %s193 = sphi 0, %s192
      %s207 = sphi 0, %s193
      %s211 = sphi 0, %s211
      %s213 = sphi 0, %s211
      %s214 = sphi 0, %s213
      %s228 = sphi 0, %s214
      %s232 = sphi 0, %s232
      %s234 = sphi 0, %s232
      %s235 = sphi 0, %s234
      %s249 = sphi 0, %s235
      %s253 = sphi 0, %s253
      %s255 = sphi 0, %s253
      %s256 = sphi 0, %s255
      %s270 = sphi 0, %s256
      %s276 = sphi 0, %s278
      %s279 = sphi 0, %s276
      %s280 = sphi 0, %s279
      %s296 = sphi 0, %s280
    $region4: #{tpu_custom_call.1} parent=1 // loop_header_branch
      %23 = sbr.rel (%p21) target = $region8
    $region5: #{tpu_custom_call.1} parent=1 // loop_body
      %s25 = ssub.s32 %s20, 1
      %s26 = ssub.s32 %s20, 2
      %s27 = sadd.s32 %s20, 1
      %s28 = ssub.s32 %s20, %s27
      %p29 = scmp.eq.s32.totalorder %s28, 0
      %s31 = sadd.s32 %s30, 1
      %s32 = scalar_select %p29, %s30, %s31
      %p35 = pneg %p29
      %p36 = scmp.eq.s32.totalorder %s20, 1
      %p37 = por %p35, %p36
      %p38 = scmp.ne.s32.totalorder %s30, %s33
      %p39 = scmp.eq.s32.totalorder %s20, 0
      %p40 = por %p38, %p39
      %p41 = scmp.ne.s32.totalorder %s30, %s33
      %p42 = scmp.eq.s32.totalorder %s25, 1
      %p43 = por %p41, %p42
      %p44 = scmp.ne.s32.totalorder %s33, %s34
      %p45 = scmp.eq.s32.totalorder %s25, 0
      %p46 = por %p44, %p45
      %p47 = scmp.ne.s32.totalorder %s33, %s34
      %p48 = scmp.eq.s32.totalorder %s26, 1
      %p49 = por %p47, %p48
      %p51 = scmp.ne.s32.totalorder %s34, %s50
      %p52 = scmp.eq.s32.totalorder %s26, 0
      %p53 = por %p51, %p52
      %s54 = ssub.s32 %s20, %s27
      %p55 = scmp.eq.s32.totalorder %s54, 0
      %s57 = sadd.s32 %s56, 1
      %s58 = scalar_select %p55, %s56, %s57
      %p61 = pneg %p55
      %p62 = scmp.eq.s32.totalorder %s20, 1
      %p63 = por %p61, %p62
      %p64 = scmp.ne.s32.totalorder %s56, %s59
      %p65 = scmp.eq.s32.totalorder %s20, 0
      %p66 = por %p64, %p65
      %p67 = scmp.ne.s32.totalorder %s56, %s59
      %p68 = scmp.eq.s32.totalorder %s25, 1
      %p69 = por %p67, %p68
      %p70 = scmp.ne.s32.totalorder %s59, %s60
      %p71 = scmp.eq.s32.totalorder %s25, 0
      %p72 = por %p70, %p71
      %p73 = scmp.ne.s32.totalorder %s59, %s60
      %p74 = scmp.eq.s32.totalorder %s26, 1
      %p75 = por %p73, %p74
      %p77 = scmp.ne.s32.totalorder %s60, %s76
      %p78 = scmp.eq.s32.totalorder %s26, 0
      %p79 = por %p77, %p78
      %s80 = ssub.s32 %s20, %s27
      %p81 = scmp.eq.s32.totalorder %s80, 0
      %s83 = sadd.s32 %s82, 1
      %s84 = scalar_select %p81, %s82, %s83
      %p87 = pneg %p81
      %p88 = scmp.eq.s32.totalorder %s20, 1
      %p89 = por %p87, %p88
      %p90 = scmp.ne.s32.totalorder %s82, %s85
      %p91 = scmp.eq.s32.totalorder %s20, 0
      %p92 = por %p90, %p91
      %p93 = scmp.ne.s32.totalorder %s82, %s85
      %p94 = scmp.eq.s32.totalorder %s25, 1
      %p95 = por %p93, %p94
      %p96 = scmp.ne.s32.totalorder %s85, %s86
      %p97 = scmp.eq.s32.totalorder %s25, 0
      %p98 = por %p96, %p97
      %p99 = scmp.ne.s32.totalorder %s85, %s86
      %p100 = scmp.eq.s32.totalorder %s26, 1
      %p101 = por %p99, %p100
      %p103 = scmp.ne.s32.totalorder %s86, %s102
      %p104 = scmp.eq.s32.totalorder %s26, 0
      %p105 = por %p103, %p104
      %s107 = sadd.s32 %s106, 1
      %p110 = scmp.eq.s32.totalorder %s20, 1
      %p111 = scmp.ne.s32.totalorder %s106, %s108
      %p112 = scmp.eq.s32.totalorder %s20, 0
      %p113 = por %p111, %p112
      %p114 = scmp.ne.s32.totalorder %s106, %s108
      %p115 = scmp.eq.s32.totalorder %s25, 1
      %p116 = por %p114, %p115
      %p117 = scmp.ne.s32.totalorder %s108, %s109
      %p118 = scmp.eq.s32.totalorder %s25, 0
      %p119 = por %p117, %p118
      %p120 = scmp.ne.s32.totalorder %s108, %s109
      %p121 = scmp.eq.s32.totalorder %s26, 1
      %p122 = por %p120, %p121
      %p124 = scmp.ne.s32.totalorder %s109, %s123
      %p125 = scmp.eq.s32.totalorder %s26, 0
      %p126 = por %p124, %p125
      %s128 = sadd.s32 %s127, 1
      %p131 = scmp.eq.s32.totalorder %s20, 1
      %p132 = scmp.ne.s32.totalorder %s127, %s129
      %p133 = scmp.eq.s32.totalorder %s20, 0
      %p134 = por %p132, %p133
      %p135 = scmp.ne.s32.totalorder %s127, %s129
      %p136 = scmp.eq.s32.totalorder %s25, 1
      %p137 = por %p135, %p136
      %p138 = scmp.ne.s32.totalorder %s129, %s130
      %p139 = scmp.eq.s32.totalorder %s25, 0
      %p140 = por %p138, %p139
      %p141 = scmp.ne.s32.totalorder %s129, %s130
      %p142 = scmp.eq.s32.totalorder %s26, 1
      %p143 = por %p141, %p142
      %p145 = scmp.ne.s32.totalorder %s130, %s144
      %p146 = scmp.eq.s32.totalorder %s26, 0
      %p147 = por %p145, %p146
      %s149 = sadd.s32 %s148, 1
      %p152 = scmp.eq.s32.totalorder %s20, 1
      %p153 = scmp.ne.s32.totalorder %s148, %s150
      %p154 = scmp.eq.s32.totalorder %s20, 0
      %p155 = por %p153, %p154
      %p156 = scmp.ne.s32.totalorder %s148, %s150
      %p157 = scmp.eq.s32.totalorder %s25, 1
      %p158 = por %p156, %p157
      %p159 = scmp.ne.s32.totalorder %s150, %s151
      %p160 = scmp.eq.s32.totalorder %s25, 0
      %p161 = por %p159, %p160
      %p162 = scmp.ne.s32.totalorder %s150, %s151
      %p163 = scmp.eq.s32.totalorder %s26, 1
      %p164 = por %p162, %p163
      %p166 = scmp.ne.s32.totalorder %s151, %s165
      %p167 = scmp.eq.s32.totalorder %s26, 0
      %p168 = por %p166, %p167
      %s170 = sadd.s32 %s169, 1
      %p173 = scmp.eq.s32.totalorder %s20, 1
      %p174 = scmp.ne.s32.totalorder %s169, %s171
      %p175 = scmp.eq.s32.totalorder %s20, 0
      %p176 = por %p174, %p175
      %p177 = scmp.ne.s32.totalorder %s169, %s171
      %p178 = scmp.eq.s32.totalorder %s25, 1
      %p179 = por %p177, %p178
      %p180 = scmp.ne.s32.totalorder %s171, %s172
      %p181 = scmp.eq.s32.totalorder %s25, 0
      %p182 = por %p180, %p181
      %p183 = scmp.ne.s32.totalorder %s171, %s172
      %p184 = scmp.eq.s32.totalorder %s26, 1
      %p185 = por %p183, %p184
      %p187 = scmp.ne.s32.totalorder %s172, %s186
      %p188 = scmp.eq.s32.totalorder %s26, 0
      %p189 = por %p187, %p188
      %s191 = sadd.s32 %s190, 1
      %p194 = scmp.eq.s32.totalorder %s20, 1
      %p195 = scmp.ne.s32.totalorder %s190, %s192
      %p196 = scmp.eq.s32.totalorder %s20, 0
      %p197 = por %p195, %p196
      %p198 = scmp.ne.s32.totalorder %s190, %s192
      %p199 = scmp.eq.s32.totalorder %s25, 1
      %p200 = por %p198, %p199
      %p201 = scmp.ne.s32.totalorder %s192, %s193
      %p202 = scmp.eq.s32.totalorder %s25, 0
      %p203 = por %p201, %p202
      %p204 = scmp.ne.s32.totalorder %s192, %s193
      %p205 = scmp.eq.s32.totalorder %s26, 1
      %p206 = por %p204, %p205
      %p208 = scmp.ne.s32.totalorder %s193, %s207
      %p209 = scmp.eq.s32.totalorder %s26, 0
      %p210 = por %p208, %p209
      %s212 = sadd.s32 %s211, 1
      %p215 = scmp.eq.s32.totalorder %s20, 1
      %p216 = scmp.ne.s32.totalorder %s211, %s213
      %p217 = scmp.eq.s32.totalorder %s20, 0
      %p218 = por %p216, %p217
      %p219 = scmp.ne.s32.totalorder %s211, %s213
      %p220 = scmp.eq.s32.totalorder %s25, 1
      %p221 = por %p219, %p220
      %p222 = scmp.ne.s32.totalorder %s213, %s214
      %p223 = scmp.eq.s32.totalorder %s25, 0
      %p224 = por %p222, %p223
      %p225 = scmp.ne.s32.totalorder %s213, %s214
      %p226 = scmp.eq.s32.totalorder %s26, 1
      %p227 = por %p225, %p226
      %p229 = scmp.ne.s32.totalorder %s214, %s228
      %p230 = scmp.eq.s32.totalorder %s26, 0
      %p231 = por %p229, %p230
      %s233 = sadd.s32 %s232, 1
      %p236 = scmp.eq.s32.totalorder %s20, 1
      %p237 = scmp.ne.s32.totalorder %s232, %s234
      %p238 = scmp.eq.s32.totalorder %s20, 0
      %p239 = por %p237, %p238
      %p240 = scmp.ne.s32.totalorder %s232, %s234
      %p241 = scmp.eq.s32.totalorder %s25, 1
      %p242 = por %p240, %p241
      %p243 = scmp.ne.s32.totalorder %s234, %s235
      %p244 = scmp.eq.s32.totalorder %s25, 0
      %p245 = por %p243, %p244
      %p246 = scmp.ne.s32.totalorder %s234, %s235
      %p247 = scmp.eq.s32.totalorder %s26, 1
      %p248 = por %p246, %p247
      %p250 = scmp.ne.s32.totalorder %s235, %s249
      %p251 = scmp.eq.s32.totalorder %s26, 0
      %p252 = por %p250, %p251
      %s254 = sadd.s32 %s253, 1
      %p257 = scmp.eq.s32.totalorder %s20, 1
      %p258 = scmp.ne.s32.totalorder %s253, %s255
      %p259 = scmp.eq.s32.totalorder %s20, 0
      %p260 = por %p258, %p259
      %p261 = scmp.ne.s32.totalorder %s253, %s255
      %p262 = scmp.eq.s32.totalorder %s25, 1
      %p263 = por %p261, %p262
      %p264 = scmp.ne.s32.totalorder %s255, %s256
      %p265 = scmp.eq.s32.totalorder %s25, 0
      %p266 = por %p264, %p265
      %p267 = scmp.ne.s32.totalorder %s255, %s256
      %p268 = scmp.eq.s32.totalorder %s26, 1
      %p269 = por %p267, %p268
      %p271 = scmp.ne.s32.totalorder %s256, %s270
      %p272 = scmp.eq.s32.totalorder %s26, 0
      %p273 = por %p271, %p272
      %s274 = ssub.s32 %s20, %s27
      %p275 = scmp.eq.s32.totalorder %s274, 0
      %s277 = sadd.s32 %s276, 1
      %s278 = scalar_select %p275, %s276, %s277
      %p281 = pneg %p275
      %p282 = scmp.eq.s32.totalorder %s20, 1
      %p283 = por %p281, %p282
      %p284 = scmp.ne.s32.totalorder %s276, %s279
      %p285 = scmp.eq.s32.totalorder %s20, 0
      %p286 = por %p284, %p285
      %p287 = scmp.ne.s32.totalorder %s276, %s279
      %p288 = scmp.eq.s32.totalorder %s25, 1
      %p289 = por %p287, %p288
      %p290 = scmp.ne.s32.totalorder %s279, %s280
      %p291 = scmp.eq.s32.totalorder %s25, 0
      %p292 = por %p290, %p291
      %p293 = scmp.ne.s32.totalorder %s279, %s280
      %p294 = scmp.eq.s32.totalorder %s26, 1
      %p295 = por %p293, %p294
      %p297 = scmp.ne.s32.totalorder %s280, %s296
      %p298 = scmp.eq.s32.totalorder %s26, 0
      %p299 = por %p297, %p298
      %p300 = scmp.le.s32.totalorder 1, %s20
      %p301 = scmp.lt.s32.totalorder %s20, 3
      %p302 = pnand %p300, %p301
      %p303 = pneg %p302
      // Predicated region
      $region9: #{tpu_custom_call.1} parent=5 // pred_check
        _
      $region10: #{tpu_custom_call.1} parent=5 // pred_check_branch
        %305 = sbr.rel (%p302) target = $region12
      $region11: #{tpu_custom_call.1} parent=5 // pred_region
        %s306 = ssub.s32 %s20, 1
        // Predicated region
        $region13: #{tpu_custom_call.1} parent=11 // pred_check
          %p307 = pneg %p119
        $region14: #{tpu_custom_call.1} parent=11 // pred_check_branch
          %309 = sbr.rel (%p307) target = $region16
        $region15: #{tpu_custom_call.1} parent=11 // pred_region
          _
        $region16: #{tpu_custom_call.1} parent=11 // pred_fallthru
          _
        // Predicated region
        $region17: #{tpu_custom_call.1} parent=11 // pred_check
          %p310 = pneg %p140
        $region18: #{tpu_custom_call.1} parent=11 // pred_check_branch
          %312 = sbr.rel (%p310) target = $region20
        $region19: #{tpu_custom_call.1} parent=11 // pred_region
          _
        $region20: #{tpu_custom_call.1} parent=11 // pred_fallthru
          _
        // Predicated region
        $region21: #{tpu_custom_call.1} parent=11 // pred_check
          %p313 = pneg %p161
        $region22: #{tpu_custom_call.1} parent=11 // pred_check_branch
          %315 = sbr.rel (%p313) target = $region24
        $region23: #{tpu_custom_call.1} parent=11 // pred_region
          _
        $region24: #{tpu_custom_call.1} parent=11 // pred_fallthru
          _
        // Predicated region
        $region25: #{tpu_custom_call.1} parent=11 // pred_check
          %p316 = pneg %p182
        $region26: #{tpu_custom_call.1} parent=11 // pred_check_branch
          %318 = sbr.rel (%p316) target = $region28
        $region27: #{tpu_custom_call.1} parent=11 // pred_region
          _
        $region28: #{tpu_custom_call.1} parent=11 // pred_fallthru
          _
        // Predicated region
        $region29: #{tpu_custom_call.1} parent=11 // pred_check
          %p319 = pneg %p203
        $region30: #{tpu_custom_call.1} parent=11 // pred_check_branch
          %321 = sbr.rel (%p319) target = $region32
        $region31: #{tpu_custom_call.1} parent=11 // pred_region
          _
        $region32: #{tpu_custom_call.1} parent=11 // pred_fallthru
          _
        // Predicated region
        $region33: #{tpu_custom_call.1} parent=11 // pred_check
          %p322 = pneg %p224
        $region34: #{tpu_custom_call.1} parent=11 // pred_check_branch
          %324 = sbr.rel (%p322) target = $region36
        $region35: #{tpu_custom_call.1} parent=11 // pred_region
          _
        $region36: #{tpu_custom_call.1} parent=11 // pred_fallthru
          _
        // Predicated region
        $region37: #{tpu_custom_call.1} parent=11 // pred_check
          %p325 = pneg %p245
        $region38: #{tpu_custom_call.1} parent=11 // pred_check_branch
          %327 = sbr.rel (%p325) target = $region40
        $region39: #{tpu_custom_call.1} parent=11 // pred_region
          _
        $region40: #{tpu_custom_call.1} parent=11 // pred_fallthru
          _
        // Predicated region
        $region41: #{tpu_custom_call.1} parent=11 // pred_check
          %p328 = pneg %p266
        $region42: #{tpu_custom_call.1} parent=11 // pred_check_branch
          %330 = sbr.rel (%p328) target = $region44
        $region43: #{tpu_custom_call.1} parent=11 // pred_region
          _
        $region44: #{tpu_custom_call.1} parent=11 // pred_fallthru
          _
      $region12: #{tpu_custom_call.1} parent=5 // pred_fallthru
        _
      %p331 = scmp.lt.s32.totalorder %s20, 2
      // Predicated region
      $region45: #{tpu_custom_call.1} parent=5 // pred_check
        %p332 = pneg %p331
      $region46: #{tpu_custom_call.1} parent=5 // pred_check_branch
        %334 = sbr.rel (%p332) target = $region48
      $region47: #{tpu_custom_call.1} parent=5 // pred_region
        // Predicated region
        $region49: #{tpu_custom_call.1} parent=47 // pred_check
          %p335 = pneg %p40
        $region50: #{tpu_custom_call.1} parent=47 // pred_check_branch
          %337 = sbr.rel (%p335) target = $region52
        $region51: #{tpu_custom_call.1} parent=47 // pred_region
          %s338 = smul.u32 2, %s20
          %p339 = scmp.lt.s32.totalorder %s338, 3
          %s340 = scalar_select %p339, %s338, 3
          %s341 = scalar_lea.vmem %s0, %s340
          %s342 = smul.u32 2, %s20
        $region52: #{tpu_custom_call.1} parent=47 // pred_fallthru
          _
        // Predicated region
        $region53: #{tpu_custom_call.1} parent=47 // pred_check
          %p343 = pneg %p66
        $region54: #{tpu_custom_call.1} parent=47 // pred_check_branch
          %345 = sbr.rel (%p343) target = $region56
        $region55: #{tpu_custom_call.1} parent=47 // pred_region
          %s346 = smul.u32 2, %s20
          %p347 = scmp.lt.s32.totalorder %s346, 3
          %s348 = scalar_select %p347, %s346, 3
          %s349 = scalar_lea.vmem %s1, %s348
          %s350 = smul.u32 2, %s20
        $region56: #{tpu_custom_call.1} parent=47 // pred_fallthru
          _
        // Predicated region
        $region57: #{tpu_custom_call.1} parent=47 // pred_check
          %p351 = pneg %p92
        $region58: #{tpu_custom_call.1} parent=47 // pred_check_branch
          %353 = sbr.rel (%p351) target = $region60
        $region59: #{tpu_custom_call.1} parent=47 // pred_region
          %s354 = smul.u32 2, %s20
          %p355 = scmp.lt.s32.totalorder %s354, 3
          %s356 = scalar_select %p355, %s354, 3
          %s357 = scalar_lea.vmem %s2, %s356
          %s358 = smul.u32 2, %s20
        $region60: #{tpu_custom_call.1} parent=47 // pred_fallthru
          _
      $region48: #{tpu_custom_call.1} parent=5 // pred_fallthru
        _
      %p359 = scmp.le.s32.totalorder 1, %s20
      %p360 = scmp.lt.s32.totalorder %s20, 3
      %p361 = pnand %p359, %p360
      %p362 = pneg %p361
      // Predicated region
      $region61: #{tpu_custom_call.1} parent=5 // pred_check
        _
      $region62: #{tpu_custom_call.1} parent=5 // pred_check_branch
        %364 = sbr.rel (%p361) target = $region64
      $region63: #{tpu_custom_call.1} parent=5 // pred_region
        %s365 = ssub.s32 %s20, 1
        %s366 = smul.u32 2, %s25
        %p367 = scmp.lt.s32.totalorder %s366, 3
        %s368 = scalar_select %p367, %s366, 3
        %s369 = scalar_lea.vmem %s0, %s368
        %p370 = pneg %p46
        %p371 = pneg %p43
        %s372 = smul.u32 2, %s25
        %p373 = scmp.lt.s32.totalorder %s372, 3
        %s374 = scalar_select %p373, %s372, 3
        %s375 = scalar_lea.vmem %s1, %s374
        %p376 = pneg %p72
        %p377 = pneg %p69
        %s378 = smul.u32 2, %s25
        %p379 = scmp.lt.s32.totalorder %s378, 3
        %s380 = scalar_select %p379, %s378, 3
        %s381 = scalar_lea.vmem %s2, %s380
        %p382 = pneg %p98
        %p383 = pneg %p95
        %p384 = pneg %p119
        %p385 = pneg %p116
        %p386 = pneg %p140
        %p387 = pneg %p137
        %p388 = pneg %p161
        %p389 = pneg %p158
        %p390 = pneg %p182
        %p391 = pneg %p179
        %p392 = pneg %p203
        %p393 = pneg %p200
        %p394 = pneg %p224
        %p395 = pneg %p221
        %p396 = pneg %p245
        %p397 = pneg %p242
        %p398 = pneg %p266
        %p399 = pneg %p263
        %p400 = pneg %p292
        %p401 = pneg %p289
        %s402 = sand.u32 %s279, 1
        %s403 = scalar_lea.sflag [#allocation3], %s402
        %s404 = sand.u32 %s279, 1
        %s405 = smul.addr %s404, 8
        %s406 = scalar_lea.vmem [#allocation2], %s405
        %s407 = smul.u32 2, %s25
        %p408 = scmp.lt.s32.totalorder %s407, 3
        %s409 = scalar_select %p408, %s407, 3
        %s410 = scalar_lea.vmem %s0, %s409
        %s411 = smul.u32 2, %s25
        %s412 = smul.u32 2, %s25
        %p413 = scmp.lt.s32.totalorder %s412, 3
        %s414 = scalar_select %p413, %s412, 3
        %s415 = scalar_lea.vmem %s1, %s414
        %s416 = smul.u32 2, %s25
        %s417 = smul.u32 2, %s25
        %p418 = scmp.lt.s32.totalorder %s417, 3
        %s419 = scalar_select %p418, %s417, 3
        %s420 = scalar_lea.vmem %s2, %s419
        %s421 = smul.u32 2, %s25
        %s422 = smul.u32 2, %s25
        %v423 = vld [vmem:[%s410] sm:$0x3]
        %v424 = vld [vmem:[%s415] sm:$0x3]
        %v425 = vld [vmem:[%s420] sm:$0x3]
        %v426 = vld [vmem:[%s3] sm:$0xff]
        %v427 = vld [vmem:[%s3 + $0x8] sm:$0xff]
        %v428 = vld [vmem:[%s3 + $0x10] sm:$0xff]
        %v429 = vld [vmem:[%s3 + $0x18] sm:$0xff]
        %v430 = vld [vmem:[%s3 + $0x20] sm:$0xff]
        %v431 = vld [vmem:[%s3 + $0x28] sm:$0xff]
        %v432 = vld [vmem:[%s3 + $0x30] sm:$0x3]
        %434 = vset.pattern.permute.xlu0 0
        %435 = vperm.xlu0 %434, %v426
        %v436 = vpop.permute.xlu0 %435
        %439 = vset.pattern.permute.xlu0 0
        %440 = vperm.xlu0 %439, %v427
        %v441 = vpop.permute.xlu0 %440
        %444 = vset.pattern.permute.xlu0 0
        %445 = vperm.xlu0 %444, %v428
        %v446 = vpop.permute.xlu0 %445
        %449 = vset.pattern.permute.xlu0 0
        %450 = vperm.xlu0 %449, %v429
        %v451 = vpop.permute.xlu0 %450
        %454 = vset.pattern.permute.xlu0 0
        %455 = vperm.xlu0 %454, %v430
        %v456 = vpop.permute.xlu0 %455
        %459 = vset.pattern.permute.xlu0 0
        %460 = vperm.xlu0 %459, %v431
        %v461 = vpop.permute.xlu0 %460
        %464 = vset.pattern.permute.xlu0 0
        %465 = vperm.xlu0 %464, %v432
        %v466 = vpop.permute.xlu0 %465
        %v469 = vlaneseq
        %v470 = vshrl.u32 %v469, 7
        %v471 = vsub.s32 0, %v470
        %v472 = vrot.slane %v423, %v471
        %v473 = vlaneseq
        %v474 = vshrl.u32 %v473, 7
        %v475 = vsub.s32 1, %v474
        %v476 = vrot.slane %v423, %v475
        %v479 = vmul.f32 %v436, %v472
        %v480 = vmul.f32 %v436, %v476
        %v481 = vmul.f32 %v441, %v472
        %v482 = vmul.f32 %v441, %v476
        %v483 = vmul.f32 %v446, %v472
        %v484 = vmul.f32 %v446, %v476
        %v485 = vmul.f32 %v451, %v472
        %v486 = vmul.f32 %v451, %v476
        %v487 = vmul.f32 %v456, %v472
        %v488 = vmul.f32 %v456, %v476
        %v489 = vmul.f32 %v461, %v472
        %v490 = vmul.f32 %v461, %v476
        %v491 = vmul.f32 %v466, %v472
        %v492 = vmul.f32 %v466, %v476
        %v493 = vld [vmem:[%s4] sm:$0xff]
        %v494 = vld [vmem:[%s4 + $0x8] sm:$0xff]
        %v495 = vld [vmem:[%s4 + $0x10] sm:$0xff]
        %v496 = vld [vmem:[%s4 + $0x18] sm:$0xff]
        %v497 = vld [vmem:[%s4 + $0x20] sm:$0xff]
        %v498 = vld [vmem:[%s4 + $0x28] sm:$0xff]
        %v499 = vld [vmem:[%s4 + $0x30] sm:$0x3]
        %501 = vset.pattern.permute.xlu0 0
        %502 = vperm.xlu0 %501, %v493
        %v503 = vpop.permute.xlu0 %502
        %506 = vset.pattern.permute.xlu0 0
        %507 = vperm.xlu0 %506, %v494
        %v508 = vpop.permute.xlu0 %507
        %511 = vset.pattern.permute.xlu0 0
        %512 = vperm.xlu0 %511, %v495
        %v513 = vpop.permute.xlu0 %512
        %516 = vset.pattern.permute.xlu0 0
        %517 = vperm.xlu0 %516, %v496
        %v518 = vpop.permute.xlu0 %517
        %521 = vset.pattern.permute.xlu0 0
        %522 = vperm.xlu0 %521, %v497
        %v523 = vpop.permute.xlu0 %522
        %526 = vset.pattern.permute.xlu0 0
        %527 = vperm.xlu0 %526, %v498
        %v528 = vpop.permute.xlu0 %527
        %531 = vset.pattern.permute.xlu0 0
        %532 = vperm.xlu0 %531, %v499
        %v533 = vpop.permute.xlu0 %532
        %v536 = vlaneseq
        %v537 = vshrl.u32 %v536, 7
        %v538 = vsub.s32 0, %v537
        %v539 = vrot.slane %v424, %v538
        %v540 = vlaneseq
        %v541 = vshrl.u32 %v540, 7
        %v542 = vsub.s32 1, %v541
        %v543 = vrot.slane %v424, %v542
        %v546 = vmul.f32 %v503, %v539
        %v547 = vmul.f32 %v503, %v543
        %v548 = vmul.f32 %v508, %v539
        %v549 = vmul.f32 %v508, %v543
        %v550 = vmul.f32 %v513, %v539
        %v551 = vmul.f32 %v513, %v543
        %v552 = vmul.f32 %v518, %v539
        %v553 = vmul.f32 %v518, %v543
        %v554 = vmul.f32 %v523, %v539
        %v555 = vmul.f32 %v523, %v543
        %v556 = vmul.f32 %v528, %v539
        %v557 = vmul.f32 %v528, %v543
        %v558 = vmul.f32 %v533, %v539
        %v559 = vmul.f32 %v533, %v543
        %v560 = vadd.f32 %v479, %v546
        %v561 = vadd.f32 %v480, %v547
        %v562 = vadd.f32 %v481, %v548
        %v563 = vadd.f32 %v482, %v549
        %v564 = vadd.f32 %v483, %v550
        %v565 = vadd.f32 %v484, %v551
        %v566 = vadd.f32 %v485, %v552
        %v567 = vadd.f32 %v486, %v553
        %v568 = vadd.f32 %v487, %v554
        %v569 = vadd.f32 %v488, %v555
        %v570 = vadd.f32 %v489, %v556
        %v571 = vadd.f32 %v490, %v557
        %v572 = vadd.f32 %v491, %v558
        %v573 = vadd.f32 %v492, %v559
        %v574 = vld [vmem:[%s5] sm:$0xff]
        %v575 = vld [vmem:[%s5 + $0x8] sm:$0xff]
        %v576 = vld [vmem:[%s5 + $0x10] sm:$0xff]
        %v577 = vld [vmem:[%s5 + $0x18] sm:$0xff]
        %v578 = vld [vmem:[%s5 + $0x20] sm:$0xff]
        %v579 = vld [vmem:[%s5 + $0x28] sm:$0xff]
        %v580 = vld [vmem:[%s5 + $0x30] sm:$0x3]
        %582 = vset.pattern.permute.xlu0 0
        %583 = vperm.xlu0 %582, %v574
        %v584 = vpop.permute.xlu0 %583
        %587 = vset.pattern.permute.xlu0 0
        %588 = vperm.xlu0 %587, %v575
        %v589 = vpop.permute.xlu0 %588
        %592 = vset.pattern.permute.xlu0 0
        %593 = vperm.xlu0 %592, %v576
        %v594 = vpop.permute.xlu0 %593
        %597 = vset.pattern.permute.xlu0 0
        %598 = vperm.xlu0 %597, %v577
        %v599 = vpop.permute.xlu0 %598
        %602 = vset.pattern.permute.xlu0 0
        %603 = vperm.xlu0 %602, %v578
        %v604 = vpop.permute.xlu0 %603
        %607 = vset.pattern.permute.xlu0 0
        %608 = vperm.xlu0 %607, %v579
        %v609 = vpop.permute.xlu0 %608
        %612 = vset.pattern.permute.xlu0 0
        %613 = vperm.xlu0 %612, %v580
        %v614 = vpop.permute.xlu0 %613
        %v617 = vlaneseq
        %v618 = vshrl.u32 %v617, 7
        %v619 = vsub.s32 0, %v618
        %v620 = vrot.slane %v425, %v619
        %v621 = vlaneseq
        %v622 = vshrl.u32 %v621, 7
        %v623 = vsub.s32 1, %v622
        %v624 = vrot.slane %v425, %v623
        %v627 = vmul.f32 %v584, %v620
        %v628 = vmul.f32 %v584, %v624
        %v629 = vmul.f32 %v589, %v620
        %v630 = vmul.f32 %v589, %v624
        %v631 = vmul.f32 %v594, %v620
        %v632 = vmul.f32 %v594, %v624
        %v633 = vmul.f32 %v599, %v620
        %v634 = vmul.f32 %v599, %v624
        %v635 = vmul.f32 %v604, %v620
        %v636 = vmul.f32 %v604, %v624
        %v637 = vmul.f32 %v609, %v620
        %v638 = vmul.f32 %v609, %v624
        %v639 = vmul.f32 %v614, %v620
        %v640 = vmul.f32 %v614, %v624
        %v641 = vadd.f32 %v560, %v627
        %v642 = vadd.f32 %v561, %v628
        %v643 = vadd.f32 %v562, %v629
        %v644 = vadd.f32 %v563, %v630
        %v645 = vadd.f32 %v564, %v631
        %v646 = vadd.f32 %v565, %v632
        %v647 = vadd.f32 %v566, %v633
        %v648 = vadd.f32 %v567, %v634
        %v649 = vadd.f32 %v568, %v635
        %v650 = vadd.f32 %v569, %v636
        %v651 = vadd.f32 %v570, %v637
        %v652 = vadd.f32 %v571, %v638
        %v653 = vadd.f32 %v572, %v639
        %v654 = vadd.f32 %v573, %v640
        %v655 = vld [vmem:[%s6] sm:$0xff]
        %v656 = vld [vmem:[%s6 + $0x8] sm:$0xff]
        %v657 = vld [vmem:[%s6 + $0x10] sm:$0xff]
        %v658 = vld [vmem:[%s6 + $0x18] sm:$0xff]
        %v659 = vld [vmem:[%s6 + $0x20] sm:$0xff]
        %v660 = vld [vmem:[%s6 + $0x28] sm:$0xff]
        %v661 = vld [vmem:[%s6 + $0x30] sm:$0x3]
        %663 = vset.pattern.permute.xlu0 0
        %664 = vperm.xlu0 %663, %v655
        %v665 = vpop.permute.xlu0 %664
        %668 = vset.pattern.permute.xlu0 0
        %669 = vperm.xlu0 %668, %v656
        %v670 = vpop.permute.xlu0 %669
        %673 = vset.pattern.permute.xlu0 0
        %674 = vperm.xlu0 %673, %v657
        %v675 = vpop.permute.xlu0 %674
        %678 = vset.pattern.permute.xlu0 0
        %679 = vperm.xlu0 %678, %v658
        %v680 = vpop.permute.xlu0 %679
        %683 = vset.pattern.permute.xlu0 0
        %684 = vperm.xlu0 %683, %v659
        %v685 = vpop.permute.xlu0 %684
        %688 = vset.pattern.permute.xlu0 0
        %689 = vperm.xlu0 %688, %v660
        %v690 = vpop.permute.xlu0 %689
        %693 = vset.pattern.permute.xlu0 0
        %694 = vperm.xlu0 %693, %v661
        %v695 = vpop.permute.xlu0 %694
        %v697 = vadd.f32 %v641, %v665
        %v698 = vadd.f32 %v642, %v665
        %v699 = vadd.f32 %v643, %v670
        %v700 = vadd.f32 %v644, %v670
        %v701 = vadd.f32 %v645, %v675
        %v702 = vadd.f32 %v646, %v675
        %v703 = vadd.f32 %v647, %v680
        %v704 = vadd.f32 %v648, %v680
        %v705 = vadd.f32 %v649, %v685
        %v706 = vadd.f32 %v650, %v685
        %v707 = vadd.f32 %v651, %v690
        %v708 = vadd.f32 %v652, %v690
        %v709 = vadd.f32 %v653, %v695
        %v710 = vadd.f32 %v654, %v695
        %v711 = vtanh.pop %v697
        %v712 = vtanh.pop %v698
        %v713 = vtanh.pop %v699
        %v714 = vtanh.pop %v700
        %v715 = vtanh.pop %v701
        %v716 = vtanh.pop %v702
        %v717 = vtanh.pop %v703
        %v718 = vtanh.pop %v704
        %v719 = vtanh.pop %v705
        %v720 = vtanh.pop %v706
        %v721 = vtanh.pop %v707
        %v722 = vtanh.pop %v708
        %v723 = vtanh.pop %v709
        %v724 = vtanh.pop %v710
        %v725 = vld [vmem:[%s7] sm:$0xff]
        %v726 = vld [vmem:[%s7 + $0x8] sm:$0xff]
        %v727 = vld [vmem:[%s7 + $0x10] sm:$0xff]
        %v728 = vld [vmem:[%s7 + $0x18] sm:$0xff]
        %v729 = vld [vmem:[%s7 + $0x20] sm:$0xff]
        %v730 = vld [vmem:[%s7 + $0x28] sm:$0xff]
        %v731 = vld [vmem:[%s7 + $0x30] sm:$0x3]
        %v732 = vld [vmem:[%s8] sm:$0xff]
        %v733 = vld [vmem:[%s8 + $0x8] sm:$0xff]
        %v734 = vld [vmem:[%s8 + $0x10] sm:$0xff]
        %v735 = vld [vmem:[%s8 + $0x18] sm:$0xff]
        %v736 = vld [vmem:[%s8 + $0x20] sm:$0xff]
        %v737 = vld [vmem:[%s8 + $0x28] sm:$0xff]
        %v738 = vld [vmem:[%s8 + $0x30] sm:$0x3]
        %740 = vset.pattern.permute.xlu0 0
        %741 = vperm.xlu0 %740, %v732
        %v742 = vpop.permute.xlu0 %741
        %745 = vset.pattern.permute.xlu0 0
        %746 = vperm.xlu0 %745, %v733
        %v747 = vpop.permute.xlu0 %746
        %750 = vset.pattern.permute.xlu0 0
        %751 = vperm.xlu0 %750, %v734
        %v752 = vpop.permute.xlu0 %751
        %755 = vset.pattern.permute.xlu0 0
        %756 = vperm.xlu0 %755, %v735
        %v757 = vpop.permute.xlu0 %756
        %760 = vset.pattern.permute.xlu0 0
        %761 = vperm.xlu0 %760, %v736
        %v762 = vpop.permute.xlu0 %761
        %765 = vset.pattern.permute.xlu0 0
        %766 = vperm.xlu0 %765, %v737
        %v767 = vpop.permute.xlu0 %766
        %770 = vset.pattern.permute.xlu0 0
        %771 = vperm.xlu0 %770, %v738
        %v772 = vpop.permute.xlu0 %771
        %vm774 = vcmask 408576
        %v776 = vsel %vm774, %v725, 0
        %v779 = vsel %vm774, %v726, 0
        %v782 = vsel %vm774, %v727, 0
        %v785 = vsel %vm774, %v728, 0
        %v788 = vsel %vm774, %v729, 0
        %v791 = vsel %vm774, %v730, 0
        %v794 = vsel %vm774, %v731, 0
        %vm796 = vcmask 1041408
        %v798 = vsel %vm796, %v723, 0
        %v801 = vsel %vm796, %v724, 0
        %803 = vmatprep.subr.mxu0 0.0
        %804 = vmatpush1.msra.mxu0 0.0
        %805 = vmatprep.subr.mxu0 0.0
        %806 = vmatpush1.msra.mxu0 0.0
        %807 = vmatprep.subr.mxu0 0.0
        %808 = vmatpush1.msra.mxu0 0.0
        %809 = vmatprep.subr.mxu0 0.0
        %810 = vmatpush1.msra.mxu0 0.0
        %811 = vmatprep.subr.mxu0 0.0
        %812 = vmatpush1.msra.mxu0 0.0
        %813 = vmatprep.subr.mxu0 0.0
        %814 = vmatpush1.msra.mxu0 0.0
        %815 = vmatprep.subr.mxu0 0.0
        %816 = vmatpush1.msra.mxu0 0.0
        %817 = vmatprep.subr.mxu0 0.0
        %818 = vmatpush1.msra.mxu0 0.0
        %819 = vmatprep.subr.mxu0 0.0
        %820 = vmatpush1.msra.mxu0 0.0
        %821 = vmatprep.subr.mxu0 %v801
        %822 = vmatpush1.msra.mxu0 %v798
        %823 = vmatprep.subr.mxu0 %v722
        %824 = vmatpush1.msra.mxu0 %v721
        %825 = vmatprep.subr.mxu0 %v720
        %826 = vmatpush1.msra.mxu0 %v719
        %827 = vmatprep.subr.mxu0 %v718
        %828 = vmatpush1.msra.mxu0 %v717
        %829 = vmatprep.subr.mxu0 %v716
        %830 = vmatpush1.msra.mxu0 %v715
        %831 = vmatprep.subr.mxu0 %v714
        %832 = vmatpush1.msra.mxu0 %v713
        %833 = vmatprep.subr.mxu0 %v712
        %834 = vmatpush1.msra.mxu0 %v711
        %835 = vmatprep.subr.mxu0 0.0
        %836 = vmatpush2.msra.mxu0 0.0
        %837 = vmatprep.subr.mxu0 0.0
        %838 = vmatpush2.msra.mxu0 0.0
        %839 = vmatprep.subr.mxu0 0.0
        %840 = vmatpush2.msra.mxu0 0.0
        %841 = vmatprep.subr.mxu0 0.0
        %842 = vmatpush2.msra.mxu0 0.0
        %843 = vmatprep.subr.mxu0 0.0
        %844 = vmatpush2.msra.mxu0 0.0
        %845 = vmatprep.subr.mxu0 0.0
        %846 = vmatpush2.msra.mxu0 0.0
        %847 = vmatprep.subr.mxu0 0.0
        %848 = vmatpush2.msra.mxu0 0.0
        %849 = vmatprep.subr.mxu0 0.0
        %850 = vmatpush2.msra.mxu0 0.0
        %851 = vmatprep.subr.mxu0 0.0
        %852 = vmatpush2.msra.mxu0 0.0
        %853 = vmatprep.subr.mxu0 0.0
        %854 = vmatpush2.msra.mxu0 0.0
        %855 = vmatprep.subr.mxu0 0.0
        %856 = vmatpush2.msra.mxu0 0.0
        %857 = vmatprep.subr.mxu0 0.0
        %858 = vmatpush2.msra.mxu0 0.0
        %859 = vmatprep.subr.mxu0 0.0
        %860 = vmatpush2.msra.mxu0 0.0
        %861 = vmatprep.subr.mxu0 0.0
        %862 = vmatpush2.msra.mxu0 0.0
        %863 = vmatprep.subr.mxu0 0.0
        %864 = vmatpush2.msra.mxu0 0.0
        %865 = vmatprep.subr.mxu0 0.0
        %866 = vmatpush2.msra.mxu0 0.0
        %867 = vmatprep.mubr.f32.mxu0 0.0
        %868 = vmatmul.mubr.f32.gmra.mxu0 %v776
        %v869 = vpop.f32.mrf.mxu0
        %v870 = vadd.f32 %v742, %v869
        %v871 = vpop.f32.mrf.mxu0
        %v872 = vadd.f32 %v742, %v871
        %873 = vmatprep.mubr.f32.mxu0 0.0
        %874 = vmatmul.mubr.f32.gmra.mxu0 %v779
        %v875 = vpop.f32.mrf.mxu0
        %v876 = vadd.f32 %v747, %v875
        %v877 = vpop.f32.mrf.mxu0
        %v878 = vadd.f32 %v747, %v877
        %879 = vmatprep.mubr.f32.mxu0 0.0
        %880 = vmatmul.mubr.f32.gmra.mxu0 %v782
        %v881 = vpop.f32.mrf.mxu0
        %v882 = vadd.f32 %v752, %v881
        %v883 = vpop.f32.mrf.mxu0
        %v884 = vadd.f32 %v752, %v883
        %885 = vmatprep.mubr.f32.mxu0 0.0
        %886 = vmatmul.mubr.f32.gmra.mxu0 %v785
        %v887 = vpop.f32.mrf.mxu0
        %v888 = vadd.f32 %v757, %v887
        %v889 = vpop.f32.mrf.mxu0
        %v890 = vadd.f32 %v757, %v889
        %891 = vmatprep.mubr.f32.mxu0 0.0
        %892 = vmatmul.mubr.f32.gmra.mxu0 %v788
        %v893 = vpop.f32.mrf.mxu0
        %v894 = vadd.f32 %v762, %v893
        %v895 = vpop.f32.mrf.mxu0
        %v896 = vadd.f32 %v762, %v895
        %897 = vmatprep.mubr.f32.mxu0 0.0
        %898 = vmatmul.mubr.f32.gmra.mxu0 %v791
        %v899 = vpop.f32.mrf.mxu0
        %v900 = vadd.f32 %v767, %v899
        %v901 = vpop.f32.mrf.mxu0
        %v902 = vadd.f32 %v767, %v901
        %903 = vmatprep.mubr.f32.mxu0 0.0
        %904 = vmatmul.mubr.f32.gmra.mxu0 %v794
        %v905 = vpop.f32.mrf.mxu0
        %v906 = vadd.f32 %v772, %v905
        %v907 = vpop.f32.mrf.mxu0
        %v908 = vadd.f32 %v772, %v907
        %909 = vdwg.mxu0
        %v910 = vtanh.pop %v870
        %v911 = vtanh.pop %v872
        %v912 = vtanh.pop %v876
        %v913 = vtanh.pop %v878
        %v914 = vtanh.pop %v882
        %v915 = vtanh.pop %v884
        %v916 = vtanh.pop %v888
        %v917 = vtanh.pop %v890
        %v918 = vtanh.pop %v894
        %v919 = vtanh.pop %v896
        %v920 = vtanh.pop %v900
        %v921 = vtanh.pop %v902
        %v922 = vtanh.pop %v906
        %v923 = vtanh.pop %v908
        %v924 = vld [vmem:[%s9] sm:$0x7]
        %v925 = vld [vmem:[%s10] sm:$0x7]
        %927 = vset.pattern.permute.xlu0 0
        %928 = vperm.xlu0 %927, %v925
        %v929 = vpop.permute.xlu0 %928
        %v932 = vsel %vm774, %v924, 0
        %v935 = vsel %vm796, %v922, 0
        %v938 = vsel %vm796, %v923, 0
        %940 = vmatprep.subr.mxu0 0.0
        %941 = vmatpush1.msra.mxu0 0.0
        %942 = vmatprep.subr.mxu0 0.0
        %943 = vmatpush1.msra.mxu0 0.0
        %944 = vmatprep.subr.mxu0 0.0
        %945 = vmatpush1.msra.mxu0 0.0
        %946 = vmatprep.subr.mxu0 0.0
        %947 = vmatpush1.msra.mxu0 0.0
        %948 = vmatprep.subr.mxu0 0.0
        %949 = vmatpush1.msra.mxu0 0.0
        %950 = vmatprep.subr.mxu0 0.0
        %951 = vmatpush1.msra.mxu0 0.0
        %952 = vmatprep.subr.mxu0 0.0
        %953 = vmatpush1.msra.mxu0 0.0
        %954 = vmatprep.subr.mxu0 0.0
        %955 = vmatpush1.msra.mxu0 0.0
        %956 = vmatprep.subr.mxu0 0.0
        %957 = vmatpush1.msra.mxu0 0.0
        %958 = vmatprep.subr.mxu0 %v938
        %959 = vmatpush1.msra.mxu0 %v935
        %960 = vmatprep.subr.mxu0 %v921
        %961 = vmatpush1.msra.mxu0 %v920
        %962 = vmatprep.subr.mxu0 %v919
        %963 = vmatpush1.msra.mxu0 %v918
        %964 = vmatprep.subr.mxu0 %v917
        %965 = vmatpush1.msra.mxu0 %v916
        %966 = vmatprep.subr.mxu0 %v915
        %967 = vmatpush1.msra.mxu0 %v914
        %968 = vmatprep.subr.mxu0 %v913
        %969 = vmatpush1.msra.mxu0 %v912
        %970 = vmatprep.subr.mxu0 %v911
        %971 = vmatpush1.msra.mxu0 %v910
        %972 = vmatprep.subr.mxu0 0.0
        %973 = vmatpush2.msra.mxu0 0.0
        %974 = vmatprep.subr.mxu0 0.0
        %975 = vmatpush2.msra.mxu0 0.0
        %976 = vmatprep.subr.mxu0 0.0
        %977 = vmatpush2.msra.mxu0 0.0
        %978 = vmatprep.subr.mxu0 0.0
        %979 = vmatpush2.msra.mxu0 0.0
        %980 = vmatprep.subr.mxu0 0.0
        %981 = vmatpush2.msra.mxu0 0.0
        %982 = vmatprep.subr.mxu0 0.0
        %983 = vmatpush2.msra.mxu0 0.0
        %984 = vmatprep.subr.mxu0 0.0
        %985 = vmatpush2.msra.mxu0 0.0
        %986 = vmatprep.subr.mxu0 0.0
        %987 = vmatpush2.msra.mxu0 0.0
        %988 = vmatprep.subr.mxu0 0.0
        %989 = vmatpush2.msra.mxu0 0.0
        %990 = vmatprep.subr.mxu0 0.0
        %991 = vmatpush2.msra.mxu0 0.0
        %992 = vmatprep.subr.mxu0 0.0
        %993 = vmatpush2.msra.mxu0 0.0
        %994 = vmatprep.subr.mxu0 0.0
        %995 = vmatpush2.msra.mxu0 0.0
        %996 = vmatprep.subr.mxu0 0.0
        %997 = vmatpush2.msra.mxu0 0.0
        %998 = vmatprep.subr.mxu0 0.0
        %999 = vmatpush2.msra.mxu0 0.0
        %1000 = vmatprep.subr.mxu0 0.0
        %1001 = vmatpush2.msra.mxu0 0.0
        %1002 = vmatprep.subr.mxu0 0.0
        %1003 = vmatpush2.msra.mxu0 0.0
        %1004 = vmatprep.mubr.f32.mxu0 0.0
        %1005 = vmatmul.mubr.f32.gmra.mxu0 %v932
        %v1006 = vpop.f32.mrf.mxu0
        %v1007 = vadd.f32 %v929, %v1006
        %v1008 = vpop.f32.mrf.mxu0
        %v1009 = vadd.f32 %v929, %v1008
        %1010 = vdwg.mxu0
        %v1013 = vcombine.low %v1007, %v1009
        %1015 = vst [vmem:[%s406] sm:$0x77] %v1013
        %s1016 = sand.u32 %s279, 1
        %s1017 = scalar_lea.sflag [#allocation3], %s1016
        %s1018 = sand.u32 %s279, 1
        %s1019 = smul.addr %s1018, 8
        %s1020 = scalar_lea.vmem [#allocation2], %s1019
        // Predicated region
        $region65: #{tpu_custom_call.1} parent=63 // pred_check
          %p1021 = pneg %p289
        $region66: #{tpu_custom_call.1} parent=63 // pred_check_branch
          %1023 = sbr.rel (%p1021) target = $region68
        $region67: #{tpu_custom_call.1} parent=63 // pred_region
          %s1024 = smul.u32 2, %s25
          %s1026 = ssub.s32 128, 128
          %1027 = vsyncadd %s1017, %s1026
          %s1028 = smul.addr %s1024, 64
          %s1029 = scalar_lea.hbm %s11, %s1028
          %s1031 = sshll.u32 %s1020, 4
          %s1032 = int_to_ptr.vmem [resolvable:$true] %s1031
          %1034 = dma.vmem_to_hbm [thread:$0]  %s1032, 128, %s1029, %s1017
        $region68: #{tpu_custom_call.1} parent=63 // pred_fallthru
          _
      $region64: #{tpu_custom_call.1} parent=5 // pred_fallthru
        _
      %p1035 = scmp.le.s32.totalorder 2, %s20
      // Predicated region
      $region69: #{tpu_custom_call.1} parent=5 // pred_check
        %p1036 = pneg %p1035
      $region70: #{tpu_custom_call.1} parent=5 // pred_check_branch
        %1038 = sbr.rel (%p1036) target = $region72
      $region71: #{tpu_custom_call.1} parent=5 // pred_region
        %s1039 = ssub.s32 %s20, 2
        // Predicated region
        $region73: #{tpu_custom_call.1} parent=71 // pred_check
          %p1040 = pneg %p295
        $region74: #{tpu_custom_call.1} parent=71 // pred_check_branch
          %1042 = sbr.rel (%p1040) target = $region76
        $region75: #{tpu_custom_call.1} parent=71 // pred_region
          %s1043 = sand.u32 %s280, 1
          %s1044 = scalar_lea.sflag [#allocation3], %s1043
          %s1045 = sand.u32 %s280, 1
          %s1046 = smul.addr %s1045, 8
          %s1047 = scalar_lea.vmem [#allocation2], %s1046
          %1048 = dma.done %s1044, 128
        $region76: #{tpu_custom_call.1} parent=71 // pred_fallthru
          _
      $region72: #{tpu_custom_call.1} parent=5 // pred_fallthru
        _
    $region6: #{tpu_custom_call.1} parent=1 // loop_footer
      %s24 = sadd.s32 1, %s20
    $region7: #{tpu_custom_call.1} parent=1 // loop_footer_branch
      %19 = sbr.rel target = $region3
    $region8: #{tpu_custom_call.1} parent=1 // loop_exit
      _
    %1049 = vsyncpa [#allocation3], 1
    %s1050 = scalar_lea.sflag [#allocation3], 1
    %1051 = vsyncpa %s1050, 1

</llo_original>
